<compile_context>
chip_gen: v5e
topology: v5e:2x2
jax: 0.10.0
libtpu: 0.0.40
codegen_flags: <defaults>
</compile_context>

<pallas_src>
import functools

import jax
import jax.numpy as jnp
from jax import lax
from jax.experimental import pallas as pl
from jax.experimental.pallas import tpu as pltpu

BN_EPS = 1e-5


# ----------------------------------------------------------------------------
# Kernel 1: ConvTranspose2d(in_ch, out_ch, kernel=2, stride=2).
# With stride == kernel there is no overlap: a single lane-dense matmul
#   (Cout*4, Cin) @ (Cin, H*W)  per (batch, spatial-tile) grid step.
# ----------------------------------------------------------------------------
def _deconv_kernel(x_ref, w_ref, b_ref, o_ref):
    y = jnp.dot(w_ref[...], x_ref[0], preferred_element_type=jnp.float32)
    o_ref[0] = (y + b_ref[...]).astype(o_ref.dtype)


# ----------------------------------------------------------------------------
# Kernel 2: fused  concat -> Conv3x3 -> BN -> ReLU -> Conv3x3 -> BN -> ReLU.
# Works on the flattened zero-padded image (C, Hp*Wp); each conv is ONE
# im2col matmul  (Cout, 9*Cin) @ (9*Cin, Hp*Wp).
# ----------------------------------------------------------------------------
def _tap_stack(x, Wp):
    """x: (C, Mp) flattened pad-1 image -> (9*C, Mp) im2col patch matrix.

    Row (t*C + c), t = dh*3 + dw, holds x shifted by (dh-1, dw-1); shifts are
    realized as static lane slices of a zero-extended copy, so reads for any
    interior output pixel never wrap.
    """
    C, Mp = x.shape
    z = jnp.zeros((C, Wp + 1), x.dtype)
    xext = jnp.concatenate([z, x, z], axis=1)          # (C, Mp + 2*Wp + 2)
    taps = []
    for dh in range(3):
        for dw in range(3):
            s = dh * Wp + dw                           # = (Wp+1) + (dh-1)*Wp + (dw-1)
            taps.append(xext[:, s:s + Mp])
    return jnp.concatenate(taps, axis=0)               # (9*C, Mp)


def _fused_conv_kernel(up_ref, x2_ref, w1_ref, s1_ref, t1_ref,
                       w2_ref, s2_ref, t2_ref, mask_ref, o_ref, *, Wp):
    # concat along channels entirely in VMEM (sublane concat, no HBM pass)
    x = jnp.concatenate([up_ref[0], x2_ref[0]], axis=0)       # (Cin1, Mp) bf16
    mask = mask_ref[...]                                      # (1, Mp) f32: 1 inside image

    # conv1: single im2col matmul, K = 9*Cin1
    xcat = _tap_stack(x, Wp)                                  # (9*Cin1, Mp)
    y1 = jnp.dot(w1_ref[...], xcat, preferred_element_type=jnp.float32)
    y1 = jnp.maximum(y1 * s1_ref[...] + t1_ref[...], 0.0) * mask  # BN+ReLU, re-zero pad frame
    y1 = y1.astype(x.dtype)                                   # bf16 for next matmul

    # conv2: single im2col matmul, K = 9*Cout
    xcat2 = _tap_stack(y1, Wp)
    y2 = jnp.dot(w2_ref[...], xcat2, preferred_element_type=jnp.float32)
    y2 = jnp.maximum(y2 * s2_ref[...] + t2_ref[...], 0.0) * mask

    o_ref[0] = y2.astype(o_ref.dtype)                         # lane-dense store (Mp lanes)


# ----------------------------------------------------------------------------
# Parameter init (deterministic, synthetic) and BN folding.
# ----------------------------------------------------------------------------
def init_params(key, in_ch, mid_ch, out_ch):
    ks = jax.random.split(key, 8)
    p = {}
    # nn.ConvTranspose2d(in_ch, out_ch, 2, stride=2): weight (in_ch, out_ch, 2, 2)
    p["up_w"] = 0.1 * jax.random.normal(ks[0], (in_ch, out_ch, 2, 2), jnp.float32)
    p["up_b"] = 0.1 * jax.random.normal(ks[1], (out_ch,), jnp.float32)
    # Conv2d(out_ch + mid_ch, out_ch, 3, padding=1) -> HWIO weight
    p["c1_w"] = 0.1 * jax.random.normal(
        ks[2], (3, 3, out_ch + mid_ch, out_ch), jnp.float32)
    p["c1_b"] = 0.1 * jax.random.normal(ks[3], (out_ch,), jnp.float32)
    p["bn1_gamma"] = 1.0 + 0.1 * jax.random.normal(ks[4], (out_ch,), jnp.float32)
    p["bn1_beta"] = 0.1 * jax.random.normal(ks[5], (out_ch,), jnp.float32)
    p["bn1_mean"] = jnp.zeros((out_ch,), jnp.float32)
    p["bn1_var"] = jnp.ones((out_ch,), jnp.float32)
    # Conv2d(out_ch, out_ch, 3, padding=1)
    p["c2_w"] = 0.1 * jax.random.normal(ks[6], (3, 3, out_ch, out_ch), jnp.float32)
    p["c2_b"] = 0.1 * jax.random.normal(ks[7], (out_ch,), jnp.float32)
    p["bn2_gamma"] = jnp.ones((out_ch,), jnp.float32)
    p["bn2_beta"] = jnp.zeros((out_ch,), jnp.float32)
    p["bn2_mean"] = jnp.zeros((out_ch,), jnp.float32)
    p["bn2_var"] = jnp.ones((out_ch,), jnp.float32)
    return p


def _fold_bn(conv_b, gamma, beta, mean, var):
    scale = gamma / jnp.sqrt(var + BN_EPS)
    shift = scale * (conv_b - mean) + beta
    return scale, shift


# ----------------------------------------------------------------------------
# Forward pass.  Inputs / output are NCHW (PyTorch convention); no NHWC
# transposes are needed because the kernels work channels-on-sublanes /
# spatial-on-lanes, which NCHW already provides after a free reshape.
# ----------------------------------------------------------------------------
def decode_layer(params, input1, input2):
    N, Cin, H, W = input1.shape
    Cout = params["up_w"].shape[1]
    Cmid = input2.shape[1]
    H2, W2 = 2 * H, 2 * W
    Hp, Wp = H2 + 2, W2 + 2
    Mp = Hp * Wp
    bf16 = jnp.bfloat16

    # ---- deconv as tiled lane-dense matmul -----------------------------
    M = H * W
    x1_flat = input1.reshape(N, Cin, M).astype(bf16)                    # free reshape
    wd = params["up_w"].transpose(1, 2, 3, 0).reshape(Cout * 4, Cin).astype(bf16)
    bd = jnp.repeat(params["up_b"], 4).reshape(Cout * 4, 1).astype(jnp.float32)
    TM = 512 if (M % 512 == 0) else M                                   # spatial tile (lanes)

    y = pl.pallas_call(
        _deconv_kernel,
        out_shape=jax.ShapeDtypeStruct((N, Cout * 4, M), bf16),
        grid=(N, M // TM),
        in_specs=[
            pl.BlockSpec((1, Cin, TM), lambda n, m: (n, 0, m)),
            pl.BlockSpec((Cout * 4, Cin), lambda n, m: (0, 0)),
            pl.BlockSpec((Cout * 4, 1), lambda n, m: (0, 0)),
        ],
        out_specs=pl.BlockSpec((1, Cout * 4, TM), lambda n, m: (n, 0, m)),
        compiler_params=pltpu.CompilerParams(
            dimension_semantics=("parallel", "parallel")),
    )(x1_flat, wd, bd)

    # 2x2 interleave (pure layout, XLA glue): (N, Cout*4, H*W) -> (N, Cout, 2H, 2W)
    up = (y.reshape(N, Cout, 2, 2, H, W)
           .transpose(0, 1, 4, 2, 5, 3)
           .reshape(N, Cout, H2, W2))

    # pad-by-1 and flatten spatial (layout only; convs consume the flat form)
    up_flat = jnp.pad(up, ((0, 0), (0, 0), (1, 1), (1, 1))).reshape(N, Cout, Mp)
    x2_flat = jnp.pad(input2.astype(bf16),
                      ((0, 0), (0, 0), (1, 1), (1, 1))).reshape(N, Cmid, Mp)

    # folded BN params + im2col weight matrices (Cout, 9*Cin)
    Cin1 = Cout + Cmid
    s1, t1 = _fold_bn(params["c1_b"], params["bn1_gamma"], params["bn1_beta"],
                      params["bn1_mean"], params["bn1_var"])
    s2, t2 = _fold_bn(params["c2_b"], params["bn2_gamma"], params["bn2_beta"],
                      params["bn2_mean"], params["bn2_var"])
    w1 = params["c1_w"].transpose(3, 0, 1, 2).reshape(Cout, 9 * Cin1).astype(bf16)
    w2 = params["c2_w"].transpose(3, 0, 1, 2).reshape(Cout, 9 * Cout).astype(bf16)

    # interior mask over the padded frame (1 inside the true image, 0 on frame)
    r = jnp.arange(Hp)
    c = jnp.arange(Wp)
    mask = (((r[:, None] >= 1) & (r[:, None] <= H2)
             & (c[None, :] >= 1) & (c[None, :] <= W2))
            .astype(jnp.float32).reshape(1, Mp))

    kernel = functools.partial(_fused_conv_kernel, Wp=Wp)
    out_flat = pl.pallas_call(
        kernel,
        out_shape=jax.ShapeDtypeStruct((N, Cout, Mp), jnp.float32),
        grid=(N,),
        in_specs=[
            pl.BlockSpec((1, Cout, Mp), lambda n: (n, 0, 0)),
            pl.BlockSpec((1, Cmid, Mp), lambda n: (n, 0, 0)),
            pl.BlockSpec((Cout, 9 * Cin1), lambda n: (0, 0)),
            pl.BlockSpec((Cout, 1), lambda n: (0, 0)),
            pl.BlockSpec((Cout, 1), lambda n: (0, 0)),
            pl.BlockSpec((Cout, 9 * Cout), lambda n: (0, 0)),
            pl.BlockSpec((Cout, 1), lambda n: (0, 0)),
            pl.BlockSpec((Cout, 1), lambda n: (0, 0)),
            pl.BlockSpec((1, Mp), lambda n: (0, 0)),
        ],
        out_specs=pl.BlockSpec((1, Cout, Mp), lambda n: (n, 0, 0)),
        compiler_params=pltpu.CompilerParams(dimension_semantics=("parallel",)),
    )(up_flat, x2_flat, w1,
      s1.reshape(Cout, 1), t1.reshape(Cout, 1),
      w2, s2.reshape(Cout, 1), t2.reshape(Cout, 1), mask)

    # strip the pad frame (layout only) -> (N, Cout, 2H, 2W) NCHW
    return out_flat.reshape(N, Cout, Hp, Wp)[:, :, 1:-1, 1:-1]


# ----------------------------------------------------------------------------
# Pure-JAX reference with matched precision (bf16 matmul operands, f32 acc).
# ----------------------------------------------------------------------------
def reference_forward(params, input1, input2):
    f32, bf16 = jnp.float32, jnp.bfloat16
    N, Cin, H, W = input1.shape
    Cout = params["up_w"].shape[1]

    x1 = input1.astype(bf16)
    w_up = params["up_w"].astype(bf16)
    y = jnp.einsum("nchw,cdij->ndijhw", x1, w_up, preferred_element_type=f32)
    y = y + params["up_b"][None, :, None, None, None, None]
    up = (y.transpose(0, 1, 4, 2, 5, 3)
           .reshape(N, Cout, 2 * H, 2 * W).astype(bf16))
    x = jnp.concatenate([up, input2.astype(bf16)], axis=1)

    def conv_bn_relu(x, w_hwio, b, g, beta, m, v):
        y = lax.conv_general_dilated(
            x, w_hwio.astype(bf16), window_strides=(1, 1), padding="SAME",
            dimension_numbers=("NCHW", "HWIO", "NCHW"),
            preferred_element_type=f32)
        y = y + b[None, :, None, None]
        y = ((y - m[None, :, None, None])
             / jnp.sqrt(v + BN_EPS)[None, :, None, None]
             * g[None, :, None, None] + beta[None, :, None, None])
        return jnp.maximum(y, 0.0)

    x = conv_bn_relu(x, params["c1_w"], params["c1_b"], params["bn1_gamma"],
                     params["bn1_beta"], params["bn1_mean"], params["bn1_var"])
    x = x.astype(bf16)
    x = conv_bn_relu(x, params["c2_w"], params["c2_b"], params["bn2_gamma"],
                     params["bn2_beta"], params["bn2_mean"], params["bn2_var"])
    return x


if __name__ == "__main__":
    # Small decoder config: in_ch=8, mid_ch=4, out_ch=4; ifscse=False.
    in_ch, mid_ch, out_ch = 8, 4, 4
    N, H, W = 2, 8, 8  # input1 spatial; upsampled to 16x16

    key = jax.random.PRNGKey(0)
    kp, k1, k2 = jax.random.split(key, 3)
    params = init_params(kp, in_ch, mid_ch, out_ch)
    input1 = jax.random.normal(k1, (N, in_ch, H, W), jnp.float32)           # NCHW
    input2 = jax.random.normal(k2, (N, mid_ch, 2 * H, 2 * W), jnp.float32)  # NCHW

    out = decode_layer(params, input1, input2)
    out = jax.block_until_ready(out)
    assert out.shape == (N, out_ch, 2 * H, 2 * W), out.shape

    ref = jax.block_until_ready(reference_forward(params, input1, input2))
    if not jnp.allclose(out, ref, atol=1e-2, rtol=1e-2):
        raise AssertionError(
            f"mismatch vs reference: max abs err "
            f"{float(jnp.max(jnp.abs(out - ref))):.3e}")

    print("KERNEL_OK")
</pallas_src>

<mosaic_0001>
module attributes {stable_mosaic.version = 11 : i64} {
  func.func @_deconv_kernel(%arg0: i32, %arg1: i32, %arg2: memref<1x8x64xbf16, #tpu.memory_space<vmem>>, %arg3: memref<16x8xbf16, #tpu.memory_space<vmem>>, %arg4: memref<16x1xf32, #tpu.memory_space<vmem>>, %arg5: memref<1x16x64xbf16, #tpu.memory_space<vmem>>) attributes {dimension_semantics = [#tpu.dimension_semantics<parallel>, #tpu.dimension_semantics<parallel>], iteration_bounds = array<i64: 2, 1>, scalar_prefetch = 0 : i64, scratch_operands = 0 : i64, tpu.core_type = #tpu.core_type<tc>, window_params = [{transform_indices = @transform_0, window_bounds = array<i64: 1, 8, 64>}, {pipeline_mode = #tpu.pipeline_mode<synchronous>, transform_indices = @transform_1, window_bounds = array<i64: 16, 8>}, {pipeline_mode = #tpu.pipeline_mode<synchronous>, transform_indices = @transform_2, window_bounds = array<i64: 16, 1>}, {transform_indices = @transform_3, window_bounds = array<i64: 1, 16, 64>}]} {
    %c0 = arith.constant 0 : index
    %c0_0 = arith.constant 0 : index
    %0 = vector.load %arg3[%c0, %c0_0] : memref<16x8xbf16, #tpu.memory_space<vmem>>, vector<16x8xbf16>
    %c0_1 = arith.constant 0 : index
    %c0_2 = arith.constant 0 : index
    %c0_3 = arith.constant 0 : index
    %1 = vector.load %arg2[%c0_1, %c0_2, %c0_3] : memref<1x8x64xbf16, #tpu.memory_space<vmem>>, vector<1x8x64xbf16>
    %2 = vector.shape_cast %1 : vector<1x8x64xbf16> to vector<8x64xbf16>
    %cst = arith.constant dense<0.000000e+00> : vector<16x64xf32>
    %3 = tpu.matmul %0, %2, %cst {dimension_numbers = #tpu.dot_dimension_numbers<[1], [0], [0], [1], [0, 0, 1, 1], [], []>} : vector<16x8xbf16>, vector<8x64xbf16>, vector<16x64xf32> -> vector<16x64xf32>
    %c0_4 = arith.constant 0 : index
    %c0_5 = arith.constant 0 : index
    %4 = vector.load %arg4[%c0_4, %c0_5] : memref<16x1xf32, #tpu.memory_space<vmem>>, vector<16x1xf32>
    %5 = vector.broadcast %4 : vector<16x1xf32> to vector<16x64xf32>
    %6 = arith.addf %3, %5 : vector<16x64xf32>
    %7 = arith.truncf %6 : vector<16x64xf32> to vector<16x64xbf16>
    %c0_6 = arith.constant 0 : index
    %c0_7 = arith.constant 0 : index
    %c0_8 = arith.constant 0 : index
    %8 = vector.load %arg5[%c0_6, %c0_7, %c0_8] : memref<1x16x64xbf16, #tpu.memory_space<vmem>>, vector<1x16x64xbf16>
    %9 = vector.shape_cast %8 : vector<1x16x64xbf16> to vector<16x64xbf16>
    %10 = vector.shape_cast %7 : vector<16x64xbf16> to vector<1x16x64xbf16>
    tpu.vector_store %arg5[%c0_6, %c0_7, %c0_8], %10 {strides = array<i32>} : memref<1x16x64xbf16, #tpu.memory_space<vmem>>, vector<1x16x64xbf16>,
    return
  }
  func.func @transform_0(%arg0: i32, %arg1: i32) -> (i32, i32, i32) {
    %c0_i32 = arith.constant 0 : i32
    %c0_i32_0 = arith.constant 0 : i32
    return %arg0, %c0_i32, %arg1 : i32, i32, i32
  }
  func.func @transform_1(%arg0: i32, %arg1: i32) -> (i32, i32) {
    %c0_i32 = arith.constant 0 : i32
    %c0_i32_0 = arith.constant 0 : i32
    %c0_i32_1 = arith.constant 0 : i32
    return %c0_i32, %c0_i32_0 : i32, i32
  }
  func.func @transform_2(%arg0: i32, %arg1: i32) -> (i32, i32) {
    %c0_i32 = arith.constant 0 : i32
    %c0_i32_0 = arith.constant 0 : i32
    %c0_i32_1 = arith.constant 0 : i32
    return %c0_i32, %c0_i32_0 : i32, i32
  }
  func.func @transform_3(%arg0: i32, %arg1: i32) -> (i32, i32, i32) {
    %c0_i32 = arith.constant 0 : i32
    %c0_i32_0 = arith.constant 0 : i32
    return %arg0, %c0_i32, %arg1 : i32, i32, i32
  }
}

</mosaic_0001>

<llo_original>
// kernel: tpu_custom_call.1
$region0: #{tpu_custom_call.1}
  #allocation0 [shape = 'u32[]', space=smem, size = 0x4, offset = 0x4, fixed_abs, tag = 'smem constant byte address 0x4 - core index']
  #allocation1 [shape = 'u32[72,128]{1,0:T(1,128)}', space=vmem, size = 0x9000, scoped, tag = 'internal scratch']
  %s0 = inlined_call_operand.vmem [shape: bf16[2,8,64], index: 0, kind: input, shape index: {}]
  %s1 = inlined_call_operand.vmem [shape: bf16[16,8], index: 1, kind: input, shape index: {}]
  %s2 = inlined_call_operand.vmem [shape: f32[16,1], index: 2, kind: input, shape index: {}]
  %s3 = inlined_call_operand.hbm [shape: bf16[2,16,64], index: 3, kind: output, shape index: {}]
  %s4 = sld [smem:[#allocation0]]
  $region45: #{tpu_custom_call.1} parent=0
    _
  %s6 = ssub.s32 1, %s4
  %s7 = scalar_select 0, %s6, %s4
  $region1: #{tpu_custom_call.1} parent=0
    #allocation2 [shape = 'u8[8192]{0}', space=vmem, size = 0x2000, scoped, tag = 'output window, operand 0']
    #allocation3 [shape = 's32[2]{0}', space=sflag, size = 0x8, scoped, tag = 'scoped memory for tpu_custom_call.1']
    %8 = vsyncpa [#allocation3], 0
    %s9 = scalar_lea.sflag [#allocation3], 1
    %10 = vsyncpa %s9, 0
    loop: start=0, step=1, limit=4
    $region2: #{tpu_custom_call.1} parent=1 // loop_pre_header
      _
    $region3: #{tpu_custom_call.1} parent=1 // loop_header
      %s12 = sphi 0, %s16
      %p13 = scmp.ge.s32.totalorder %s12, 4
      %s19 = sphi 0, %s31
      %s20 = sphi 0, %s27
      %s21 = sphi 0, %s19
      %s22 = sphi 0, %s20
      %s23 = sphi 0, %s21
      %s24 = sphi 0, %s22
      %s36 = sphi 0, %s38
      %s39 = sphi 0, %s36
      %s40 = sphi 0, %s39
      %s56 = sphi 0, %s40
      %s60 = sphi 0, %s60
      %s62 = sphi 0, %s60
      %s63 = sphi 0, %s62
      %s77 = sphi 0, %s63
      %s81 = sphi 0, %s81
      %s83 = sphi 0, %s81
      %s84 = sphi 0, %s83
      %s98 = sphi 0, %s84
      %s106 = sphi 0, %s108
      %s109 = sphi 0, %s106
      %s110 = sphi 0, %s109
      %s126 = sphi 0, %s110
    $region4: #{tpu_custom_call.1} parent=1 // loop_header_branch
      %15 = sbr.rel (%p13) target = $region8
    $region5: #{tpu_custom_call.1} parent=1 // loop_body
      %s17 = ssub.s32 %s12, 1
      %s18 = ssub.s32 %s12, 2
      %s25 = sadd.s32 1, %s20
      %p26 = scmp.ge.s32.totalorder %s25, 1
      %s27 = scalar_select %p26, 0, %s25
      %s28 = sadd.s32 1, %s19
      %s29 = scalar_select %p26, %s28, %s19
      %p30 = scmp.ge.s32.totalorder %s29, 2
      %s31 = scalar_select %p30, 0, %s29
      %s32 = ssub.s32 %s19, %s31
      %s33 = ssub.s32 %s20, %s27
      %s34 = sor.u32 %s32, %s33
      %p35 = scmp.eq.s32.totalorder %s34, 0
      %s37 = sadd.s32 %s36, 1
      %s38 = scalar_select %p35, %s36, %s37
      %p41 = pneg %p35
      %p42 = scmp.eq.s32.totalorder %s12, 1
      %p43 = por %p41, %p42
      %p44 = scmp.ne.s32.totalorder %s36, %s39
      %p45 = scmp.eq.s32.totalorder %s12, 0
      %p46 = por %p44, %p45
      %p47 = scmp.ne.s32.totalorder %s36, %s39
      %p48 = scmp.eq.s32.totalorder %s17, 1
      %p49 = por %p47, %p48
      %p50 = scmp.ne.s32.totalorder %s39, %s40
      %p51 = scmp.eq.s32.totalorder %s17, 0
      %p52 = por %p50, %p51
      %p53 = scmp.ne.s32.totalorder %s39, %s40
      %p54 = scmp.eq.s32.totalorder %s18, 1
      %p55 = por %p53, %p54
      %p57 = scmp.ne.s32.totalorder %s40, %s56
      %p58 = scmp.eq.s32.totalorder %s18, 0
      %p59 = por %p57, %p58
      %s61 = sadd.s32 %s60, 1
      %p64 = scmp.eq.s32.totalorder %s12, 1
      %p65 = scmp.ne.s32.totalorder %s60, %s62
      %p66 = scmp.eq.s32.totalorder %s12, 0
      %p67 = por %p65, %p66
      %p68 = scmp.ne.s32.totalorder %s60, %s62
      %p69 = scmp.eq.s32.totalorder %s17, 1
      %p70 = por %p68, %p69
      %p71 = scmp.ne.s32.totalorder %s62, %s63
      %p72 = scmp.eq.s32.totalorder %s17, 0
      %p73 = por %p71, %p72
      %p74 = scmp.ne.s32.totalorder %s62, %s63
      %p75 = scmp.eq.s32.totalorder %s18, 1
      %p76 = por %p74, %p75
      %p78 = scmp.ne.s32.totalorder %s63, %s77
      %p79 = scmp.eq.s32.totalorder %s18, 0
      %p80 = por %p78, %p79
      %s82 = sadd.s32 %s81, 1
      %p85 = scmp.eq.s32.totalorder %s12, 1
      %p86 = scmp.ne.s32.totalorder %s81, %s83
      %p87 = scmp.eq.s32.totalorder %s12, 0
      %p88 = por %p86, %p87
      %p89 = scmp.ne.s32.totalorder %s81, %s83
      %p90 = scmp.eq.s32.totalorder %s17, 1
      %p91 = por %p89, %p90
      %p92 = scmp.ne.s32.totalorder %s83, %s84
      %p93 = scmp.eq.s32.totalorder %s17, 0
      %p94 = por %p92, %p93
      %p95 = scmp.ne.s32.totalorder %s83, %s84
      %p96 = scmp.eq.s32.totalorder %s18, 1
      %p97 = por %p95, %p96
      %p99 = scmp.ne.s32.totalorder %s84, %s98
      %p100 = scmp.eq.s32.totalorder %s18, 0
      %p101 = por %p99, %p100
      %s102 = ssub.s32 %s19, %s31
      %s103 = ssub.s32 %s20, %s27
      %s104 = sor.u32 %s102, %s103
      %p105 = scmp.eq.s32.totalorder %s104, 0
      %s107 = sadd.s32 %s106, 1
      %s108 = scalar_select %p105, %s106, %s107
      %p111 = pneg %p105
      %p112 = scmp.eq.s32.totalorder %s12, 1
      %p113 = por %p111, %p112
      %p114 = scmp.ne.s32.totalorder %s106, %s109
      %p115 = scmp.eq.s32.totalorder %s12, 0
      %p116 = por %p114, %p115
      %p117 = scmp.ne.s32.totalorder %s106, %s109
      %p118 = scmp.eq.s32.totalorder %s17, 1
      %p119 = por %p117, %p118
      %p120 = scmp.ne.s32.totalorder %s109, %s110
      %p121 = scmp.eq.s32.totalorder %s17, 0
      %p122 = por %p120, %p121
      %p123 = scmp.ne.s32.totalorder %s109, %s110
      %p124 = scmp.eq.s32.totalorder %s18, 1
      %p125 = por %p123, %p124
      %p127 = scmp.ne.s32.totalorder %s110, %s126
      %p128 = scmp.eq.s32.totalorder %s18, 0
      %p129 = por %p127, %p128
      %p130 = scmp.le.s32.totalorder 1, %s12
      %p131 = scmp.lt.s32.totalorder %s12, 3
      %p132 = pnand %p130, %p131
      %p133 = pneg %p132
      // Predicated region
      $region9: #{tpu_custom_call.1} parent=5 // pred_check
        _
      $region10: #{tpu_custom_call.1} parent=5 // pred_check_branch
        %135 = sbr.rel (%p132) target = $region12
      $region11: #{tpu_custom_call.1} parent=5 // pred_region
        %s136 = ssub.s32 %s12, 1
        // Predicated region
        $region13: #{tpu_custom_call.1} parent=11 // pred_check
          %p137 = pneg %p73
        $region14: #{tpu_custom_call.1} parent=11 // pred_check_branch
          %139 = sbr.rel (%p137) target = $region16
        $region15: #{tpu_custom_call.1} parent=11 // pred_region
          _
        $region16: #{tpu_custom_call.1} parent=11 // pred_fallthru
          _
        // Predicated region
        $region17: #{tpu_custom_call.1} parent=11 // pred_check
          %p140 = pneg %p94
        $region18: #{tpu_custom_call.1} parent=11 // pred_check_branch
          %142 = sbr.rel (%p140) target = $region20
        $region19: #{tpu_custom_call.1} parent=11 // pred_region
          _
        $region20: #{tpu_custom_call.1} parent=11 // pred_fallthru
          _
      $region12: #{tpu_custom_call.1} parent=5 // pred_fallthru
        _
      %p143 = scmp.lt.s32.totalorder %s12, 2
      // Predicated region
      $region21: #{tpu_custom_call.1} parent=5 // pred_check
        %p144 = pneg %p143
      $region22: #{tpu_custom_call.1} parent=5 // pred_check_branch
        %146 = sbr.rel (%p144) target = $region24
      $region23: #{tpu_custom_call.1} parent=5 // pred_region
        // Predicated region
        $region25: #{tpu_custom_call.1} parent=23 // pred_check
          %p147 = pneg %p46
        $region26: #{tpu_custom_call.1} parent=23 // pred_check_branch
          %149 = sbr.rel (%p147) target = $region28
        $region27: #{tpu_custom_call.1} parent=23 // pred_region
          %p150 = scmp.lt.s32.totalorder %s19, 1
          %s151 = scalar_select %p150, %s19, 1
          %p152 = scmp.lt.s32.totalorder %s20, 0
          %s153 = scalar_select %p152, %s20, 0
          %s154 = sadd.s32 %s153, %s151
          %s155 = smul.addr %s154, 4
          %s156 = scalar_lea.vmem %s0, %s155
        $region28: #{tpu_custom_call.1} parent=23 // pred_fallthru
          _
      $region24: #{tpu_custom_call.1} parent=5 // pred_fallthru
        _
      %p157 = scmp.le.s32.totalorder 1, %s12
      %p158 = scmp.lt.s32.totalorder %s12, 3
      %p159 = pnand %p157, %p158
      %p160 = pneg %p159
      // Predicated region
      $region29: #{tpu_custom_call.1} parent=5 // pred_check
        _
      $region30: #{tpu_custom_call.1} parent=5 // pred_check_branch
        %162 = sbr.rel (%p159) target = $region32
      $region31: #{tpu_custom_call.1} parent=5 // pred_region
        %s163 = ssub.s32 %s12, 1
        %p164 = scmp.lt.s32.totalorder %s21, 1
        %s165 = scalar_select %p164, %s21, 1
        %p166 = scmp.lt.s32.totalorder %s22, 0
        %s167 = scalar_select %p166, %s22, 0
        %s168 = sadd.s32 %s167, %s165
        %s169 = smul.addr %s168, 4
        %s170 = scalar_lea.vmem %s0, %s169
        %p171 = pneg %p52
        %p172 = pneg %p49
        %p173 = pneg %p73
        %p174 = pneg %p70
        %p175 = pneg %p94
        %p176 = pneg %p91
        %p177 = pneg %p122
        %p178 = pneg %p119
        %s179 = sand.u32 %s109, 1
        %s180 = scalar_lea.sflag [#allocation3], %s179
        %s181 = sand.u32 %s109, 1
        %s182 = smul.addr %s181, 8
        %s183 = scalar_lea.vmem [#allocation2], %s182
        %p184 = scmp.lt.s32.totalorder %s21, 1
        %s185 = scalar_select %p184, %s21, 1
        %p186 = scmp.lt.s32.totalorder %s22, 0
        %s187 = scalar_select %p186, %s22, 0
        %s188 = sadd.s32 %s187, %s185
        %s189 = smul.addr %s188, 4
        %s190 = scalar_lea.vmem %s0, %s189
        %v192 = vld [vmem:[%s1] sm:$0xf]
        %v193 = vld [vmem:[%s1 + $0x4] sm:$0xf]
        %v194 = vld [vmem:[%s190] sm:$0xf]
        %v195 = vld [vmem:[%s2] sm:$0xff]
        %v196 = vld [vmem:[%s2 + $0x8] sm:$0xff]
        %198 = vset.pattern.permute.xlu0 0
        %199 = vperm.xlu0 %198, %v195
        %v200 = vpop.permute.xlu0 %199
        %203 = vset.pattern.permute.xlu0 0
        %204 = vperm.xlu0 %203, %v196
        %v205 = vpop.permute.xlu0 %204
        %v209 = vunpack.c.l.b16 %v192
        %v210 = vunpack.c.l.b16 %v193
        %v211 = vpack.c.b16 %v210, %v209
        %vm212 = vcmask 64512
        %v214 = vsel %vm212, %v211, 0
        %vm216 = vcmask 1043456
        %v218 = vsel %vm216, %v194, 0
        %220 = vmatpush.bf16.msra.mxu0 0
        %221 = vmatpush.bf16.msra.mxu0 0
        %222 = vmatpush.bf16.msra.mxu0 0
        %223 = vmatpush.bf16.msra.mxu0 0
        %224 = vmatpush.bf16.msra.mxu0 0
        %225 = vmatpush.bf16.msra.mxu0 0
        %226 = vmatpush.bf16.msra.mxu0 0
        %227 = vmatpush.bf16.msra.mxu0 %v218
        %228 = vmatmul.bf16.gmra.mxu0 %v214
        %v229 = vpop.f32.mrf.mxu0
        %v230 = vadd.f32 %v200, %v229
        %v231 = vpop.f32.mrf.mxu0
        %v232 = vadd.f32 %v205, %v231
        %233 = vdwg.mxu0
        %v234 = vpack.c.bf16 %v230, %v230
        %v235 = vpack.c.bf16 %v232, %v232
        %vm236 = vcmask 519168
        %237 = vst.msk [vmem:[%s183] sm:$0xf] %vm236, %v234
        %238 = vst.msk [vmem:[%s183 + $0x4] sm:$0xf] %vm236, %v235
        %s239 = sand.u32 %s109, 1
        %s240 = scalar_lea.sflag [#allocation3], %s239
        %s241 = sand.u32 %s109, 1
        %s242 = smul.addr %s241, 8
        %s243 = scalar_lea.vmem [#allocation2], %s242
        // Predicated region
        $region33: #{tpu_custom_call.1} parent=31 // pred_check
          %p244 = pneg %p119
        $region34: #{tpu_custom_call.1} parent=31 // pred_check_branch
          %246 = sbr.rel (%p244) target = $region36
        $region35: #{tpu_custom_call.1} parent=31 // pred_region
          %248 = vsyncadd %s240, 0
          %s249 = smul.addr %s21, 2
          %s250 = sadd.s32 %s22, %s249
          %s251 = smul.addr %s250, 4
          %s252 = scalar_lea.hbm %s3, %s251
          %s253 = sshll.u32 %s243, 4
          %s254 = int_to_ptr.vmem [resolvable:$true] %s253
          %s255 = sshll.u32 %s252, 4
          %s256 = int_to_ptr.hbm [resolvable:$true] %s255
          %261 = dma.vmem_to_hbm [thread:$0]  %s254, 128, %s256, %s240, 64, 64, 4
        $region36: #{tpu_custom_call.1} parent=31 // pred_fallthru
          _
      $region32: #{tpu_custom_call.1} parent=5 // pred_fallthru
        _
      %p262 = scmp.le.s32.totalorder 2, %s12
      // Predicated region
      $region37: #{tpu_custom_call.1} parent=5 // pred_check
        %p263 = pneg %p262
      $region38: #{tpu_custom_call.1} parent=5 // pred_check_branch
        %265 = sbr.rel (%p263) target = $region40
      $region39: #{tpu_custom_call.1} parent=5 // pred_region
        %s266 = ssub.s32 %s12, 2
        // Predicated region
        $region41: #{tpu_custom_call.1} parent=39 // pred_check
          %p267 = pneg %p125
        $region42: #{tpu_custom_call.1} parent=39 // pred_check_branch
          %269 = sbr.rel (%p267) target = $region44
        $region43: #{tpu_custom_call.1} parent=39 // pred_region
          %s270 = sand.u32 %s110, 1
          %s271 = scalar_lea.sflag [#allocation3], %s270
          %s272 = sand.u32 %s110, 1
          %s273 = smul.addr %s272, 8
          %s274 = scalar_lea.vmem [#allocation2], %s273
          %276 = dma.done %s271, 128
        $region44: #{tpu_custom_call.1} parent=39 // pred_fallthru
          _
      $region40: #{tpu_custom_call.1} parent=5 // pred_fallthru
        _
    $region6: #{tpu_custom_call.1} parent=1 // loop_footer
      %s16 = sadd.s32 1, %s12
    $region7: #{tpu_custom_call.1} parent=1 // loop_footer_branch
      %11 = sbr.rel target = $region3
    $region8: #{tpu_custom_call.1} parent=1 // loop_exit
      _
    %277 = vsyncpa [#allocation3], 1
    %s278 = scalar_lea.sflag [#allocation3], 1
    %279 = vsyncpa %s278, 1

</llo_original>
